<compile_context>
chip_gen: v5e
topology: v5e:2x2
jax: 0.10.0
libtpu: 0.0.40
codegen_flags: <defaults>
</compile_context>

<pallas_src>
import jax
import jax.numpy as jnp
import numpy as np
from jax.experimental import pallas as pl
from jax.experimental.pallas import tpu as pltpu


def _shortcut_conv_kernel(xpad_ref, xres_ref, w_ref, b_ref, o_ref):
    """One batch element per grid step.

    xpad_ref: (H+2, (W+2)*C) bf16  zero-padded input, width/channel flattened
    xres_ref: (H,   W*C)     f32   un-padded input (exact residual)
    w_ref:    (3, (W+2)*C, W*C) bf16  banded conv weight, one slab per row tap
    b_ref:    (1, W*C)       f32   bias tiled across the W groups of lanes
    o_ref:    (H, W*C)             output = x + conv3x3(x) + bias
    """
    H = o_ref.shape[0]
    conv = None
    for dy in range(3):  # unrolled at trace time: 3 row-shifted MXU matmuls
        part = jnp.dot(xpad_ref[dy:dy + H, :], w_ref[dy],
                       preferred_element_type=jnp.float32)
        conv = part if conv is None else conv + part
    out = xres_ref[...] + conv + b_ref[...]          # residual + bias in f32
    o_ref[...] = out.astype(o_ref.dtype)


def _build_banded_weight(weight_oihw, W, C):
    """Expand the (Cout, Cin, 3, 3) conv weight into 3 banded matrices.

    For row tap dy, the matrix Wd[dy] has shape ((W+2)*C, W*C) with
      Wd[dy][(w+dx)*C + ci, w*C + co] = weight[co, ci, dy, dx]
    so that  xpad_rows[dy:dy+H] @ Wd[dy]  yields that row tap's contribution
    to all (w, co) outputs at once, in the lane-dense (H, W*C) layout.
    """
    w_taps = jnp.transpose(weight_oihw, (2, 3, 1, 0))     # (dy, dx, ci, co)
    Wp = W + 2
    eye_w = jnp.eye(W, dtype=weight_oihw.dtype)
    mats = []
    for dy in range(3):
        acc = jnp.zeros((Wp * C, W * C), weight_oihw.dtype)
        for dx in range(3):
            a = w_taps[dy, dx]                            # (C, C)
            bd = (eye_w[:, None, :, None] * a[None, :, None, :]
                  ).reshape(W * C, W * C)                 # block-diag kron(I_W, a)
            acc = acc.at[dx * C:dx * C + W * C, :].add(bd)
        mats.append(acc)
    return jnp.stack(mats, axis=0)                        # (3, (W+2)*C, W*C)


@jax.jit
def shortcut_block(x_nchw, weight_oihw, bias):
    """out = x + conv3x3(x, padding=1, bias), matching PyTorch NCHW semantics."""
    N, C, H, W = x_nchw.shape
    Hp, Wp = H + 2, W + 2
    WC, WpC = W * C, Wp * C

    # --- glue: NCHW -> NHWC, SAME pad, flatten (W, C) into the lane dim ---
    x_nhwc = jnp.transpose(x_nchw, (0, 2, 3, 1))                     # (N,H,W,C)
    x_res = x_nhwc.reshape(N, H, WC)                                 # f32 residual
    x_pad = jnp.pad(x_nhwc, ((0, 0), (1, 1), (1, 1), (0, 0)))
    x_pad = x_pad.reshape(N, Hp, WpC).astype(jnp.bfloat16)           # bf16 MXU feed

    w_band = _build_banded_weight(weight_oihw, W, C).astype(jnp.bfloat16)
    b_lane = jnp.tile(bias, W).reshape(1, WC)                        # f32

    out_bytes = N * H * WC * 4
    bytes_accessed = (x_pad.size * 2 + x_res.size * 4
                      + w_band.size * 2 + b_lane.size * 4 + out_bytes)

    out_flat = pl.pallas_call(
        _shortcut_conv_kernel,
        out_shape=jax.ShapeDtypeStruct((N, H, WC), x_nchw.dtype),
        grid_spec=pl.GridSpec(
            grid=(N,),
            in_specs=[
                pl.BlockSpec((pl.Squeezed(), Hp, WpC), lambda n: (n, 0, 0)),
                pl.BlockSpec((pl.Squeezed(), H, WC), lambda n: (n, 0, 0)),
                pl.BlockSpec((3, WpC, WC), lambda n: (0, 0, 0)),
                pl.BlockSpec((1, WC), lambda n: (0, 0)),
            ],
            out_specs=pl.BlockSpec((pl.Squeezed(), H, WC), lambda n: (n, 0, 0)),
        ),
        compiler_params=pltpu.CompilerParams(
            dimension_semantics=("parallel",),
            vmem_limit_bytes=32 * 1024 * 1024),
        cost_estimate=pl.CostEstimate(
            flops=2 * N * 3 * H * WpC * WC,
            transcendentals=0,
            bytes_accessed=bytes_accessed),
    )(x_pad, x_res, w_band, b_lane)

    # --- glue: back to NCHW ---
    return jnp.transpose(out_flat.reshape(N, H, W, C), (0, 3, 1, 2))


def _reference(x_nchw, weight_oihw, bias):
    """Pure-JAX f32 reference: x + Conv2d(x, padding=1, bias)."""
    x_nhwc = jnp.transpose(x_nchw, (0, 2, 3, 1))
    w_hwio = jnp.transpose(weight_oihw, (2, 3, 1, 0))
    y = jax.lax.conv_general_dilated(
        x_nhwc, w_hwio, window_strides=(1, 1), padding="SAME",
        dimension_numbers=("NHWC", "HWIO", "NHWC"))
    y = y + bias.reshape(1, 1, 1, -1)
    out = x_nhwc + y
    return jnp.transpose(out, (0, 3, 1, 2))


if __name__ == "__main__":
    N, C, H, W = 2, 8, 16, 16   # W*C = 128 -> perfectly lane-dense output slabs

    key = jax.random.PRNGKey(0)
    kx, kw, kb = jax.random.split(key, 3)

    x = jax.random.normal(kx, (N, C, H, W), dtype=jnp.float32)
    fan_in = C * 3 * 3
    weight = jax.random.normal(kw, (C, C, 3, 3), dtype=jnp.float32) / np.sqrt(fan_in)
    bias = 0.01 * jax.random.normal(kb, (C,), dtype=jnp.float32)

    out = jax.block_until_ready(shortcut_block(x, weight, bias))
    ref = jax.block_until_ready(_reference(x, weight, bias))

    # Tolerance accounts for bf16 matmul inputs (f32 accumulation, f32 residual).
    np.testing.assert_allclose(np.asarray(out), np.asarray(ref),
                               rtol=2e-2, atol=3e-2)
    print("KERNEL_OK")
</pallas_src>

<mosaic_0001>
module attributes {stable_mosaic.version = 11 : i64} {
  func.func @_shortcut_conv_kernel(%arg0: i32, %arg1: memref<1x18x144xbf16, #tpu.memory_space<vmem>>, %arg2: memref<1x16x128xf32, #tpu.memory_space<vmem>>, %arg3: memref<3x144x128xbf16, #tpu.memory_space<vmem>>, %arg4: memref<1x128xf32, #tpu.memory_space<vmem>>, %arg5: memref<1x16x128xf32, #tpu.memory_space<vmem>>) attributes {dimension_semantics = [#tpu.dimension_semantics<parallel>], iteration_bounds = array<i64: 2>, scalar_prefetch = 0 : i64, scratch_operands = 0 : i64, tpu.core_type = #tpu.core_type<tc>, window_params = [{transform_indices = @transform_0, window_bounds = array<i64: 1, 18, 144>}, {transform_indices = @transform_1, window_bounds = array<i64: 1, 16, 128>}, {pipeline_mode = #tpu.pipeline_mode<synchronous>, transform_indices = @transform_2, window_bounds = array<i64: 3, 144, 128>}, {pipeline_mode = #tpu.pipeline_mode<synchronous>, transform_indices = @transform_3, window_bounds = array<i64: 1, 128>}, {transform_indices = @transform_4, window_bounds = array<i64: 1, 16, 128>}]} {
    %c0 = arith.constant 0 : index
    %c0_0 = arith.constant 0 : index
    %c0_1 = arith.constant 0 : index
    %0 = vector.load %arg1[%c0, %c0_0, %c0_1] : memref<1x18x144xbf16, #tpu.memory_space<vmem>>, vector<1x16x144xbf16>
    %1 = vector.shape_cast %0 : vector<1x16x144xbf16> to vector<16x144xbf16>
    %c0_2 = arith.constant 0 : index
    %c0_3 = arith.constant 0 : index
    %c0_4 = arith.constant 0 : index
    %2 = vector.load %arg3[%c0_2, %c0_3, %c0_4] : memref<3x144x128xbf16, #tpu.memory_space<vmem>>, vector<1x144x128xbf16>
    %3 = vector.shape_cast %2 : vector<1x144x128xbf16> to vector<144x128xbf16>
    %cst = arith.constant dense<0.000000e+00> : vector<16x128xf32>
    %4 = tpu.matmul %1, %3, %cst {dimension_numbers = #tpu.dot_dimension_numbers<[1], [0], [0], [1], [0, 0, 1, 1], [], []>} : vector<16x144xbf16>, vector<144x128xbf16>, vector<16x128xf32> -> vector<16x128xf32>
    %c0_5 = arith.constant 0 : index
    %c1 = arith.constant 1 : index
    %c0_6 = arith.constant 0 : index
    %5 = vector.load %arg1[%c0_5, %c1, %c0_6] : memref<1x18x144xbf16, #tpu.memory_space<vmem>>, vector<1x16x144xbf16>
    %6 = vector.shape_cast %5 : vector<1x16x144xbf16> to vector<16x144xbf16>
    %c1_7 = arith.constant 1 : index
    %c0_8 = arith.constant 0 : index
    %c0_9 = arith.constant 0 : index
    %7 = vector.load %arg3[%c1_7, %c0_8, %c0_9] : memref<3x144x128xbf16, #tpu.memory_space<vmem>>, vector<1x144x128xbf16>
    %8 = vector.shape_cast %7 : vector<1x144x128xbf16> to vector<144x128xbf16>
    %cst_10 = arith.constant dense<0.000000e+00> : vector<16x128xf32>
    %9 = tpu.matmul %6, %8, %cst_10 {dimension_numbers = #tpu.dot_dimension_numbers<[1], [0], [0], [1], [0, 0, 1, 1], [], []>} : vector<16x144xbf16>, vector<144x128xbf16>, vector<16x128xf32> -> vector<16x128xf32>
    %10 = arith.addf %4, %9 : vector<16x128xf32>
    %c0_11 = arith.constant 0 : index
    %c2 = arith.constant 2 : index
    %c0_12 = arith.constant 0 : index
    %11 = vector.load %arg1[%c0_11, %c2, %c0_12] : memref<1x18x144xbf16, #tpu.memory_space<vmem>>, vector<1x16x144xbf16>
    %12 = vector.shape_cast %11 : vector<1x16x144xbf16> to vector<16x144xbf16>
    %c2_13 = arith.constant 2 : index
    %c0_14 = arith.constant 0 : index
    %c0_15 = arith.constant 0 : index
    %13 = vector.load %arg3[%c2_13, %c0_14, %c0_15] : memref<3x144x128xbf16, #tpu.memory_space<vmem>>, vector<1x144x128xbf16>
    %14 = vector.shape_cast %13 : vector<1x144x128xbf16> to vector<144x128xbf16>
    %cst_16 = arith.constant dense<0.000000e+00> : vector<16x128xf32>
    %15 = tpu.matmul %12, %14, %cst_16 {dimension_numbers = #tpu.dot_dimension_numbers<[1], [0], [0], [1], [0, 0, 1, 1], [], []>} : vector<16x144xbf16>, vector<144x128xbf16>, vector<16x128xf32> -> vector<16x128xf32>
    %16 = arith.addf %10, %15 : vector<16x128xf32>
    %c0_17 = arith.constant 0 : index
    %c0_18 = arith.constant 0 : index
    %c0_19 = arith.constant 0 : index
    %17 = vector.load %arg2[%c0_17, %c0_18, %c0_19] : memref<1x16x128xf32, #tpu.memory_space<vmem>>, vector<1x16x128xf32>
    %18 = vector.shape_cast %17 : vector<1x16x128xf32> to vector<16x128xf32>
    %19 = arith.addf %18, %16 : vector<16x128xf32>
    %c0_20 = arith.constant 0 : index
    %c0_21 = arith.constant 0 : index
    %20 = vector.load %arg4[%c0_20, %c0_21] : memref<1x128xf32, #tpu.memory_space<vmem>>, vector<1x128xf32>
    %21 = vector.broadcast %20 : vector<1x128xf32> to vector<16x128xf32>
    %22 = arith.addf %19, %21 : vector<16x128xf32>
    %c0_22 = arith.constant 0 : index
    %c0_23 = arith.constant 0 : index
    %c0_24 = arith.constant 0 : index
    %23 = vector.load %arg5[%c0_22, %c0_23, %c0_24] : memref<1x16x128xf32, #tpu.memory_space<vmem>>, vector<1x16x128xf32>
    %24 = vector.shape_cast %23 : vector<1x16x128xf32> to vector<16x128xf32>
    %25 = vector.shape_cast %22 : vector<16x128xf32> to vector<1x16x128xf32>
    tpu.vector_store %arg5[%c0_22, %c0_23, %c0_24], %25 {strides = array<i32>} : memref<1x16x128xf32, #tpu.memory_space<vmem>>, vector<1x16x128xf32>,
    return
  }
  func.func @transform_0(%arg0: i32) -> (i32, i32, i32) {
    %c0_i32 = arith.constant 0 : i32
    %c0_i32_0 = arith.constant 0 : i32
    %c0_i32_1 = arith.constant 0 : i32
    return %arg0, %c0_i32, %c0_i32_0 : i32, i32, i32
  }
  func.func @transform_1(%arg0: i32) -> (i32, i32, i32) {
    %c0_i32 = arith.constant 0 : i32
    %c0_i32_0 = arith.constant 0 : i32
    %c0_i32_1 = arith.constant 0 : i32
    return %arg0, %c0_i32, %c0_i32_0 : i32, i32, i32
  }
  func.func @transform_2(%arg0: i32) -> (i32, i32, i32) {
    %c0_i32 = arith.constant 0 : i32
    %c0_i32_0 = arith.constant 0 : i32
    %c0_i32_1 = arith.constant 0 : i32
    %c0_i32_2 = arith.constant 0 : i32
    return %c0_i32, %c0_i32_0, %c0_i32_1 : i32, i32, i32
  }
  func.func @transform_3(%arg0: i32) -> (i32, i32) {
    %c0_i32 = arith.constant 0 : i32
    %c0_i32_0 = arith.constant 0 : i32
    %c0_i32_1 = arith.constant 0 : i32
    return %c0_i32, %c0_i32_0 : i32, i32
  }
  func.func @transform_4(%arg0: i32) -> (i32, i32, i32) {
    %c0_i32 = arith.constant 0 : i32
    %c0_i32_0 = arith.constant 0 : i32
    %c0_i32_1 = arith.constant 0 : i32
    return %arg0, %c0_i32, %c0_i32_0 : i32, i32, i32
  }
}

</mosaic_0001>

<llo_original>
// kernel: tile.8
$region0: #{tile.8}
  #allocation0 [shape = 's32[1]{0}', space=sflag, size = 0x4, scoped, tag = 'scoped memory for tile.8']
  %s0 = inlined_call_operand.vmem [shape: f32[8], index: 0, kind: input, shape index: {}]
  %s1 = inlined_call_operand.vmem [shape: f32[16,8], index: 1, kind: output, shape index: {}]
  // Predicated region
  $region2: #{tile.8} parent=0 // pred_check
    _
  $region3: #{tile.8} parent=0 // pred_check_branch
    %3 = sbr.rel (0) target = $region5
  $region4: #{tile.8} parent=0 // pred_region
    _
  $region5: #{tile.8} parent=0 // pred_fallthru
    _
  %v4 = vld [vmem:[%s0] ss:$0 sm:$0xff]
  %5 = vst [vmem:[%s1] sm:$0xff] %v4
  %s6 = scalar_lea.vmem %s1, 8
  %7 = vst [vmem:[%s6] sm:$0xff] %v4

// kernel: tile.9
$region0: #{tile.9}
  %s0 = inlined_call_operand.vmem [shape: f32[16,8], index: 0, kind: input, shape index: {}]
  %s1 = inlined_call_operand.vmem [shape: f32[1,128], index: 1, kind: output, shape index: {}]
  $region1: #{tile.9} parent=0
    #allocation0 [shape = 'u8[4096]{0}', space=vmem, size = 0x1000, scoped, tag = 'scoped mem for output reshape']
    %v2 = vld [vmem:[%s0] sm:$0x1]
    %vm3 = vcmask 64512
    %4 = vst.msk [vmem:[#allocation0] sm:$0x1] %vm3, %v2
    %s5 = scalar_lea.vmem %s0, 15
    %v6 = vld [vmem:[%s5] sm:$0x1]
    %7 = vrot.lane.b32.xlu0 %v6, 120
    %v8 = vpop.permute.xlu0 %7
    %vm9 = vcmask 1048512
    %10 = vst.msk [vmem:[#allocation0] sm:$0x1] %vm9, %v8
    %s11 = scalar_lea.vmem %s0, 14
    %v12 = vld [vmem:[%s11] sm:$0x1]
    %13 = vrot.lane.b32.xlu0 %v12, 112
    %v14 = vpop.permute.xlu0 %13
    %vm15 = vcmask 982912
    %16 = vst.msk [vmem:[#allocation0] sm:$0x1] %vm15, %v14
    %s17 = scalar_lea.vmem %s0, 13
    %v18 = vld [vmem:[%s17] sm:$0x1]
    %19 = vrot.lane.b32.xlu0 %v18, 104
    %v20 = vpop.permute.xlu0 %19
    %vm21 = vcmask 917312
    %22 = vst.msk [vmem:[#allocation0] sm:$0x1] %vm21, %v20
    %s23 = scalar_lea.vmem %s0, 12
    %v24 = vld [vmem:[%s23] sm:$0x1]
    %25 = vrot.lane.b32.xlu0 %v24, 96
    %v26 = vpop.permute.xlu0 %25
    %vm27 = vcmask 851712
    %28 = vst.msk [vmem:[#allocation0] sm:$0x1] %vm27, %v26
    %s29 = scalar_lea.vmem %s0, 11
    %v30 = vld [vmem:[%s29] sm:$0x1]
    %31 = vrot.lane.b32.xlu0 %v30, 88
    %v32 = vpop.permute.xlu0 %31
    %vm33 = vcmask 786112
    %34 = vst.msk [vmem:[#allocation0] sm:$0x1] %vm33, %v32
    %s35 = scalar_lea.vmem %s0, 10
    %v36 = vld [vmem:[%s35] sm:$0x1]
    %37 = vrot.lane.b32.xlu0 %v36, 80
    %v38 = vpop.permute.xlu0 %37
    %vm39 = vcmask 720512
    %40 = vst.msk [vmem:[#allocation0] sm:$0x1] %vm39, %v38
    %s41 = scalar_lea.vmem %s0, 9
    %v42 = vld [vmem:[%s41] sm:$0x1]
    %43 = vrot.lane.b32.xlu0 %v42, 72
    %v44 = vpop.permute.xlu0 %43
    %vm45 = vcmask 654912
    %46 = vst.msk [vmem:[#allocation0] sm:$0x1] %vm45, %v44
    %s47 = scalar_lea.vmem %s0, 8
    %v48 = vld [vmem:[%s47] sm:$0x1]
    %49 = vrot.lane.b32.xlu0 %v48, 64
    %v50 = vpop.permute.xlu0 %49
    %vm51 = vcmask 589312
    %52 = vst.msk [vmem:[#allocation0] sm:$0x1] %vm51, %v50
    %s53 = scalar_lea.vmem %s0, 7
    %v54 = vld [vmem:[%s53] sm:$0x1]
    %55 = vrot.lane.b32.xlu0 %v54, 56
    %v56 = vpop.permute.xlu0 %55
    %vm57 = vcmask 523712
    %58 = vst.msk [vmem:[#allocation0] sm:$0x1] %vm57, %v56
    %s59 = scalar_lea.vmem %s0, 6
    %v60 = vld [vmem:[%s59] sm:$0x1]
    %61 = vrot.lane.b32.xlu0 %v60, 48
    %v62 = vpop.permute.xlu0 %61
    %vm63 = vcmask 458112
    %64 = vst.msk [vmem:[#allocation0] sm:$0x1] %vm63, %v62
    %s65 = scalar_lea.vmem %s0, 5
    %v66 = vld [vmem:[%s65] sm:$0x1]
    %67 = vrot.lane.b32.xlu0 %v66, 40
    %v68 = vpop.permute.xlu0 %67
    %vm69 = vcmask 392512
    %70 = vst.msk [vmem:[#allocation0] sm:$0x1] %vm69, %v68
    %s71 = scalar_lea.vmem %s0, 4
    %v72 = vld [vmem:[%s71] sm:$0x1]
    %73 = vrot.lane.b32.xlu0 %v72, 32
    %v74 = vpop.permute.xlu0 %73
    %vm75 = vcmask 326912
    %76 = vst.msk [vmem:[#allocation0] sm:$0x1] %vm75, %v74
    %s77 = scalar_lea.vmem %s0, 3
    %v78 = vld [vmem:[%s77] sm:$0x1]
    %79 = vrot.lane.b32.xlu0 %v78, 24
    %v80 = vpop.permute.xlu0 %79
    %vm81 = vcmask 261312
    %82 = vst.msk [vmem:[#allocation0] sm:$0x1] %vm81, %v80
    %s83 = scalar_lea.vmem %s0, 2
    %v84 = vld [vmem:[%s83] sm:$0x1]
    %85 = vrot.lane.b32.xlu0 %v84, 16
    %v86 = vpop.permute.xlu0 %85
    %vm87 = vcmask 195712
    %88 = vst.msk [vmem:[#allocation0] sm:$0x1] %vm87, %v86
    %s89 = scalar_lea.vmem %s0, 1
    %v90 = vld [vmem:[%s89] sm:$0x1]
    %91 = vrot.lane.b32.xlu0 %v90, 8
    %v92 = vpop.permute.xlu0 %91
    %vm93 = vcmask 130112
    %94 = vst.msk [vmem:[#allocation0] sm:$0x1] %vm93, %v92
    %s96 = ssub.s32 2, 1
    %v97 = vld [vmem:[#allocation0] sm:%s96]
    %s99 = ssub.s32 2, 1
    %100 = vst [vmem:[%s1] sm:%s99] %v97

// kernel: shortcut_block.1
$region0: #{shortcut_block.1}
  #allocation0 [shape = 'u32[]', space=smem, size = 0x4, offset = 0x4, fixed_abs, tag = 'smem constant byte address 0x4 - core index']
  #allocation1 [shape = 'u32[72,128]{1,0:T(1,128)}', space=vmem, size = 0x9000, scoped, tag = 'internal scratch']
  %s0 = inlined_call_operand.vmem [shape: bf16[2,18,144], index: 0, kind: input, shape index: {}]
  %s1 = inlined_call_operand.vmem [shape: f32[2,16,128], index: 1, kind: input, shape index: {}]
  %s2 = inlined_call_operand.vmem [shape: bf16[3,144,128], index: 2, kind: input, shape index: {}]
  %s3 = inlined_call_operand.vmem [shape: f32[1,128], index: 3, kind: input, shape index: {}]
  %s4 = inlined_call_operand.vmem [shape: f32[2,16,128], index: 4, kind: output, shape index: {}]
  %s5 = sld [smem:[#allocation0]]
  $region49: #{shortcut_block.1} parent=0
    _
  %s7 = ssub.s32 1, %s5
  %s8 = scalar_select 0, %s7, %s5
  loop: start=0, step=1, limit=4
  $region2: #{shortcut_block.1} parent=0 // loop_pre_header
    _
  $region3: #{shortcut_block.1} parent=0 // loop_header
    %s10 = sphi 0, %s14
    %p11 = scmp.ge.s32.totalorder %s10, 4
    %s20 = sphi 0, %s22
    %s23 = sphi 0, %s20
    %s24 = sphi 0, %s23
    %s40 = sphi 0, %s24
    %s46 = sphi 0, %s48
    %s49 = sphi 0, %s46
    %s50 = sphi 0, %s49
    %s66 = sphi 0, %s50
    %s70 = sphi 0, %s70
    %s72 = sphi 0, %s70
    %s73 = sphi 0, %s72
    %s87 = sphi 0, %s73
    %s91 = sphi 0, %s91
    %s93 = sphi 0, %s91
    %s94 = sphi 0, %s93
    %s108 = sphi 0, %s94
    %s114 = sphi 0, %s116
    %s117 = sphi 0, %s114
    %s118 = sphi 0, %s117
    %s134 = sphi 0, %s118
  $region4: #{shortcut_block.1} parent=0 // loop_header_branch
    %13 = sbr.rel (%p11) target = $region8
  $region5: #{shortcut_block.1} parent=0 // loop_body
    %s15 = ssub.s32 %s10, 1
    %s16 = ssub.s32 %s10, 2
    %s17 = sadd.s32 %s10, 1
    %s18 = ssub.s32 %s10, %s17
    %p19 = scmp.eq.s32.totalorder %s18, 0
    %s21 = sadd.s32 %s20, 1
    %s22 = scalar_select %p19, %s20, %s21
    %p25 = pneg %p19
    %p26 = scmp.eq.s32.totalorder %s10, 1
    %p27 = por %p25, %p26
    %p28 = scmp.ne.s32.totalorder %s20, %s23
    %p29 = scmp.eq.s32.totalorder %s10, 0
    %p30 = por %p28, %p29
    %p31 = scmp.ne.s32.totalorder %s20, %s23
    %p32 = scmp.eq.s32.totalorder %s15, 1
    %p33 = por %p31, %p32
    %p34 = scmp.ne.s32.totalorder %s23, %s24
    %p35 = scmp.eq.s32.totalorder %s15, 0
    %p36 = por %p34, %p35
    %p37 = scmp.ne.s32.totalorder %s23, %s24
    %p38 = scmp.eq.s32.totalorder %s16, 1
    %p39 = por %p37, %p38
    %p41 = scmp.ne.s32.totalorder %s24, %s40
    %p42 = scmp.eq.s32.totalorder %s16, 0
    %p43 = por %p41, %p42
    %s44 = ssub.s32 %s10, %s17
    %p45 = scmp.eq.s32.totalorder %s44, 0
    %s47 = sadd.s32 %s46, 1
    %s48 = scalar_select %p45, %s46, %s47
    %p51 = pneg %p45
    %p52 = scmp.eq.s32.totalorder %s10, 1
    %p53 = por %p51, %p52
    %p54 = scmp.ne.s32.totalorder %s46, %s49
    %p55 = scmp.eq.s32.totalorder %s10, 0
    %p56 = por %p54, %p55
    %p57 = scmp.ne.s32.totalorder %s46, %s49
    %p58 = scmp.eq.s32.totalorder %s15, 1
    %p59 = por %p57, %p58
    %p60 = scmp.ne.s32.totalorder %s49, %s50
    %p61 = scmp.eq.s32.totalorder %s15, 0
    %p62 = por %p60, %p61
    %p63 = scmp.ne.s32.totalorder %s49, %s50
    %p64 = scmp.eq.s32.totalorder %s16, 1
    %p65 = por %p63, %p64
    %p67 = scmp.ne.s32.totalorder %s50, %s66
    %p68 = scmp.eq.s32.totalorder %s16, 0
    %p69 = por %p67, %p68
    %s71 = sadd.s32 %s70, 1
    %p74 = scmp.eq.s32.totalorder %s10, 1
    %p75 = scmp.ne.s32.totalorder %s70, %s72
    %p76 = scmp.eq.s32.totalorder %s10, 0
    %p77 = por %p75, %p76
    %p78 = scmp.ne.s32.totalorder %s70, %s72
    %p79 = scmp.eq.s32.totalorder %s15, 1
    %p80 = por %p78, %p79
    %p81 = scmp.ne.s32.totalorder %s72, %s73
    %p82 = scmp.eq.s32.totalorder %s15, 0
    %p83 = por %p81, %p82
    %p84 = scmp.ne.s32.totalorder %s72, %s73
    %p85 = scmp.eq.s32.totalorder %s16, 1
    %p86 = por %p84, %p85
    %p88 = scmp.ne.s32.totalorder %s73, %s87
    %p89 = scmp.eq.s32.totalorder %s16, 0
    %p90 = por %p88, %p89
    %s92 = sadd.s32 %s91, 1
    %p95 = scmp.eq.s32.totalorder %s10, 1
    %p96 = scmp.ne.s32.totalorder %s91, %s93
    %p97 = scmp.eq.s32.totalorder %s10, 0
    %p98 = por %p96, %p97
    %p99 = scmp.ne.s32.totalorder %s91, %s93
    %p100 = scmp.eq.s32.totalorder %s15, 1
    %p101 = por %p99, %p100
    %p102 = scmp.ne.s32.totalorder %s93, %s94
    %p103 = scmp.eq.s32.totalorder %s15, 0
    %p104 = por %p102, %p103
    %p105 = scmp.ne.s32.totalorder %s93, %s94
    %p106 = scmp.eq.s32.totalorder %s16, 1
    %p107 = por %p105, %p106
    %p109 = scmp.ne.s32.totalorder %s94, %s108
    %p110 = scmp.eq.s32.totalorder %s16, 0
    %p111 = por %p109, %p110
    %s112 = ssub.s32 %s10, %s17
    %p113 = scmp.eq.s32.totalorder %s112, 0
    %s115 = sadd.s32 %s114, 1
    %s116 = scalar_select %p113, %s114, %s115
    %p119 = pneg %p113
    %p120 = scmp.eq.s32.totalorder %s10, 1
    %p121 = por %p119, %p120
    %p122 = scmp.ne.s32.totalorder %s114, %s117
    %p123 = scmp.eq.s32.totalorder %s10, 0
    %p124 = por %p122, %p123
    %p125 = scmp.ne.s32.totalorder %s114, %s117
    %p126 = scmp.eq.s32.totalorder %s15, 1
    %p127 = por %p125, %p126
    %p128 = scmp.ne.s32.totalorder %s117, %s118
    %p129 = scmp.eq.s32.totalorder %s15, 0
    %p130 = por %p128, %p129
    %p131 = scmp.ne.s32.totalorder %s117, %s118
    %p132 = scmp.eq.s32.totalorder %s16, 1
    %p133 = por %p131, %p132
    %p135 = scmp.ne.s32.totalorder %s118, %s134
    %p136 = scmp.eq.s32.totalorder %s16, 0
    %p137 = por %p135, %p136
    %p138 = scmp.le.s32.totalorder 1, %s10
    %p139 = scmp.lt.s32.totalorder %s10, 3
    %p140 = pnand %p138, %p139
    %p141 = pneg %p140
    // Predicated region
    $region9: #{shortcut_block.1} parent=5 // pred_check
      _
    $region10: #{shortcut_block.1} parent=5 // pred_check_branch
      %143 = sbr.rel (%p140) target = $region12
    $region11: #{shortcut_block.1} parent=5 // pred_region
      %s144 = ssub.s32 %s10, 1
      // Predicated region
      $region13: #{shortcut_block.1} parent=11 // pred_check
        %p145 = pneg %p83
      $region14: #{shortcut_block.1} parent=11 // pred_check_branch
        %147 = sbr.rel (%p145) target = $region16
      $region15: #{shortcut_block.1} parent=11 // pred_region
        _
      $region16: #{shortcut_block.1} parent=11 // pred_fallthru
        _
      // Predicated region
      $region17: #{shortcut_block.1} parent=11 // pred_check
        %p148 = pneg %p104
      $region18: #{shortcut_block.1} parent=11 // pred_check_branch
        %150 = sbr.rel (%p148) target = $region20
      $region19: #{shortcut_block.1} parent=11 // pred_region
        _
      $region20: #{shortcut_block.1} parent=11 // pred_fallthru
        _
    $region12: #{shortcut_block.1} parent=5 // pred_fallthru
      _
    %p151 = scmp.lt.s32.totalorder %s10, 2
    // Predicated region
    $region21: #{shortcut_block.1} parent=5 // pred_check
      %p152 = pneg %p151
    $region22: #{shortcut_block.1} parent=5 // pred_check_branch
      %154 = sbr.rel (%p152) target = $region24
    $region23: #{shortcut_block.1} parent=5 // pred_region
      // Predicated region
      $region25: #{shortcut_block.1} parent=23 // pred_check
        %p155 = pneg %p30
      $region26: #{shortcut_block.1} parent=23 // pred_check_branch
        %157 = sbr.rel (%p155) target = $region28
      $region27: #{shortcut_block.1} parent=23 // pred_region
        %p158 = scmp.lt.s32.totalorder %s10, 1
        %s159 = scalar_select %p158, %s10, 1
        %s160 = smul.addr %s159, 6
        %s161 = smul.addr %s160, 4
        %s162 = scalar_lea.vmem %s0, %s161
      $region28: #{shortcut_block.1} parent=23 // pred_fallthru
        _
      // Predicated region
      $region29: #{shortcut_block.1} parent=23 // pred_check
        %p163 = pneg %p56
      $region30: #{shortcut_block.1} parent=23 // pred_check_branch
        %165 = sbr.rel (%p163) target = $region32
      $region31: #{shortcut_block.1} parent=23 // pred_region
        %p166 = scmp.lt.s32.totalorder %s10, 1
        %s167 = scalar_select %p166, %s10, 1
        %s168 = smul.addr %s167, 2
        %s169 = smul.addr %s168, 8
        %s170 = scalar_lea.vmem %s1, %s169
      $region32: #{shortcut_block.1} parent=23 // pred_fallthru
        _
    $region24: #{shortcut_block.1} parent=5 // pred_fallthru
      _
    %p171 = scmp.le.s32.totalorder 1, %s10
    %p172 = scmp.lt.s32.totalorder %s10, 3
    %p173 = pnand %p171, %p172
    %p174 = pneg %p173
    // Predicated region
    $region33: #{shortcut_block.1} parent=5 // pred_check
      _
    $region34: #{shortcut_block.1} parent=5 // pred_check_branch
      %176 = sbr.rel (%p173) target = $region36
    $region35: #{shortcut_block.1} parent=5 // pred_region
      %s177 = ssub.s32 %s10, 1
      %p178 = scmp.lt.s32.totalorder %s15, 1
      %s179 = scalar_select %p178, %s15, 1
      %s180 = smul.addr %s179, 6
      %s181 = smul.addr %s180, 4
      %s182 = scalar_lea.vmem %s0, %s181
      %p183 = pneg %p36
      %p184 = pneg %p33
      %p185 = scmp.lt.s32.totalorder %s15, 1
      %s186 = scalar_select %p185, %s15, 1
      %s187 = smul.addr %s186, 2
      %s188 = smul.addr %s187, 8
      %s189 = scalar_lea.vmem %s1, %s188
      %p190 = pneg %p62
      %p191 = pneg %p59
      %p192 = pneg %p83
      %p193 = pneg %p80
      %p194 = pneg %p104
      %p195 = pneg %p101
      %p196 = pneg %p130
      %p197 = pneg %p127
      %p198 = scmp.lt.s32.totalorder %s15, 1
      %s199 = scalar_select %p198, %s15, 1
      %s200 = smul.addr %s199, 2
      %s201 = smul.addr %s200, 8
      %s202 = scalar_lea.vmem %s4, %s201
      %p203 = scmp.lt.s32.totalorder %s15, 1
      %s204 = scalar_select %p203, %s15, 1
      %s205 = smul.addr %s204, 6
      %s206 = smul.addr %s205, 4
      %s207 = scalar_lea.vmem %s0, %s206
      %p208 = scmp.lt.s32.totalorder %s15, 1
      %s209 = scalar_select %p208, %s15, 1
      %s210 = smul.addr %s209, 2
      %s211 = smul.addr %s210, 8
      %s212 = scalar_lea.vmem %s1, %s211
      %p213 = scmp.lt.s32.totalorder %s15, 1
      %s214 = scalar_select %p213, %s15, 1
      %s215 = smul.addr %s214, 2
      %s216 = smul.addr %s215, 8
      %s217 = scalar_lea.vmem %s4, %s216
      %v219 = vld [vmem:[%s207] sm:$0xff]
      %v220 = vld [vmem:[%s207 + $0x8] sm:$0xff]
      %v221 = vld [vmem:[%s2] sm:$0xf]
      %v222 = vld [vmem:[%s2 + $0x4] sm:$0xf]
      %v223 = vld [vmem:[%s2 + $0x8] sm:$0xf]
      %v224 = vld [vmem:[%s2 + $0xc] sm:$0xf]
      %v225 = vld [vmem:[%s2 + $0x10] sm:$0xf]
      %v226 = vld [vmem:[%s2 + $0x14] sm:$0xf]
      %v227 = vld [vmem:[%s2 + $0x18] sm:$0xf]
      %v228 = vld [vmem:[%s2 + $0x1c] sm:$0xf]
      %v229 = vld [vmem:[%s2 + $0x20] sm:$0xf]
      %v230 = vld [vmem:[%s2 + $0x24] sm:$0xf]
      %v231 = vld [vmem:[%s2 + $0x28] sm:$0xf]
      %v232 = vld [vmem:[%s2 + $0x2c] sm:$0xf]
      %v233 = vld [vmem:[%s2 + $0x30] sm:$0xf]
      %v234 = vld [vmem:[%s2 + $0x34] sm:$0xf]
      %v235 = vld [vmem:[%s2 + $0x38] sm:$0xf]
      %v236 = vld [vmem:[%s2 + $0x3c] sm:$0xf]
      %v237 = vld [vmem:[%s2 + $0x40] sm:$0xf]
      %v238 = vld [vmem:[%s2 + $0x44] sm:$0xf]
      %v239 = vld [vmem:[%s207 + $0x10] sm:$0x11]
      %s240 = scalar_lea.vmem %s2, 72
      %v241 = vld [vmem:[%s240] sm:$0xf]
      %v242 = vld [vmem:[%s240 + $0x4] sm:$0xf]
      %v243 = vld [vmem:[%s240 + $0x8] sm:$0xf]
      %v244 = vld [vmem:[%s240 + $0xc] sm:$0xf]
      %v245 = vld [vmem:[%s240 + $0x10] sm:$0xf]
      %v246 = vld [vmem:[%s240 + $0x14] sm:$0xf]
      %v247 = vld [vmem:[%s240 + $0x18] sm:$0xf]
      %v248 = vld [vmem:[%s240 + $0x1c] sm:$0xf]
      %v249 = vld [vmem:[%s240 + $0x20] sm:$0xf]
      %v250 = vld [vmem:[%s240 + $0x24] sm:$0xf]
      %v251 = vld [vmem:[%s240 + $0x28] sm:$0xf]
      %v252 = vld [vmem:[%s240 + $0x2c] sm:$0xf]
      %v253 = vld [vmem:[%s240 + $0x30] sm:$0xf]
      %v254 = vld [vmem:[%s240 + $0x34] sm:$0xf]
      %v255 = vld [vmem:[%s240 + $0x38] sm:$0xf]
      %v256 = vld [vmem:[%s240 + $0x3c] sm:$0xf]
      %v257 = vld [vmem:[%s240 + $0x40] sm:$0xf]
      %v258 = vld [vmem:[%s240 + $0x44] sm:$0xf]
      %v262 = vunpack.c.l.b16 %v219
      %v263 = vunpack.c.h.b16 %v219
      %v264 = vunpack.c.l.b16 %v220
      %v265 = vunpack.c.h.b16 %v220
      %v266 = vunpack.c.l.b16 %v239
      %v267 = vunpack.c.h.b16 %v239
      %v268 = vpack.c.b16 %v264, %v262
      %v269 = vpack.c.b16 %v265, %v263
      %v270 = vpack.c.b16 %v266, %v266
      %v271 = vpack.c.b16 %v267, %v267
      %vm272 = vsmask.f32 7424
      %v274 = vshrl.u32 %v268, 16
      %v276 = vshll.u32 %v268, 16
      %v278 = vrot.slane %v276, 1
      %v279 = vor.u32 %v274, %v278
      %v281 = vshll.u32 %v270, 16
      %v283 = vrot.slane %v281, 1
      %v284 = vsel %vm272, %v279, %v283
      %v286 = vshrl.u32 %v269, 16
      %v288 = vshll.u32 %v269, 16
      %v290 = vrot.slane %v288, 1
      %v291 = vor.u32 %v286, %v290
      %v293 = vshll.u32 %v271, 16
      %v295 = vrot.slane %v293, 1
      %v296 = vsel %vm272, %v291, %v295
      %v316 = vunpack.c.l.b16 %v241
      %v317 = vunpack.c.l.b16 %v242
      %v318 = vunpack.c.l.b16 %v243
      %v319 = vunpack.c.l.b16 %v244
      %v320 = vunpack.c.l.b16 %v245
      %v321 = vunpack.c.l.b16 %v246
      %v322 = vunpack.c.l.b16 %v247
      %v323 = vunpack.c.l.b16 %v248
      %v324 = vunpack.c.l.b16 %v249
      %v325 = vunpack.c.l.b16 %v250
      %v326 = vunpack.c.l.b16 %v251
      %v327 = vunpack.c.l.b16 %v252
      %v328 = vunpack.c.l.b16 %v253
      %v329 = vunpack.c.l.b16 %v254
      %v330 = vunpack.c.l.b16 %v255
      %v331 = vunpack.c.l.b16 %v256
      %v332 = vunpack.c.l.b16 %v257
      %v333 = vunpack.c.l.b16 %v258
      %v334 = vpack.c.b16 %v317, %v316
      %v335 = vpack.c.b16 %v319, %v318
      %v336 = vpack.c.b16 %v321, %v320
      %v337 = vpack.c.b16 %v323, %v322
      %v338 = vpack.c.b16 %v325, %v324
      %v339 = vpack.c.b16 %v327, %v326
      %v340 = vpack.c.b16 %v329, %v328
      %v341 = vpack.c.b16 %v331, %v330
      %v342 = vpack.c.b16 %v333, %v332
      %vm352 = vcmask 130048
      %v354 = vsel %vm352, %v296, 0
      %356 = vmatpush.bf16.msra.mxu0 %v341
      %357 = vmatpush.bf16.msra.mxu0 %v340
      %358 = vmatpush.bf16.msra.mxu0 %v339
      %359 = vmatpush.bf16.msra.mxu0 %v338
      %360 = vmatpush.bf16.msra.mxu0 %v337
      %361 = vmatpush.bf16.msra.mxu0 %v336
      %362 = vmatpush.bf16.msra.mxu0 %v335
      %363 = vmatpush.bf16.msra.mxu0 %v334
      %364 = vmatmul.bf16.gmra.mxu0 %v284
      %v365 = vpop.f32.mrf.mxu0
      %v366 = vadd.f32 0.0, %v365
      %v367 = vpop.f32.mrf.mxu0
      %v368 = vadd.f32 0.0, %v367
      %369 = vdwg.mxu0
      %370 = vmatpush.bf16.msra.mxu0 0
      %371 = vmatpush.bf16.msra.mxu0 0
      %372 = vmatpush.bf16.msra.mxu0 0
      %373 = vmatpush.bf16.msra.mxu0 0
      %374 = vmatpush.bf16.msra.mxu0 0
      %375 = vmatpush.bf16.msra.mxu0 0
      %376 = vmatpush.bf16.msra.mxu0 0
      %377 = vmatpush.bf16.msra.mxu0 %v342
      %378 = vmatmul.bf16.gmra.mxu0 %v354
      %v379 = vpop.f32.mrf.mxu0
      %v380 = vadd.f32 %v366, %v379
      %v381 = vpop.f32.mrf.mxu0
      %v382 = vadd.f32 %v368, %v381
      %383 = vdwg.mxu0
      %v403 = vunpack.c.l.b16 %v221
      %v404 = vunpack.c.l.b16 %v222
      %v405 = vunpack.c.l.b16 %v223
      %v406 = vunpack.c.l.b16 %v224
      %v407 = vunpack.c.l.b16 %v225
      %v408 = vunpack.c.l.b16 %v226
      %v409 = vunpack.c.l.b16 %v227
      %v410 = vunpack.c.l.b16 %v228
      %v411 = vunpack.c.l.b16 %v229
      %v412 = vunpack.c.l.b16 %v230
      %v413 = vunpack.c.l.b16 %v231
      %v414 = vunpack.c.l.b16 %v232
      %v415 = vunpack.c.l.b16 %v233
      %v416 = vunpack.c.l.b16 %v234
      %v417 = vunpack.c.l.b16 %v235
      %v418 = vunpack.c.l.b16 %v236
      %v419 = vunpack.c.l.b16 %v237
      %v420 = vunpack.c.l.b16 %v238
      %v421 = vpack.c.b16 %v404, %v403
      %v422 = vpack.c.b16 %v406, %v405
      %v423 = vpack.c.b16 %v408, %v407
      %v424 = vpack.c.b16 %v410, %v409
      %v425 = vpack.c.b16 %v412, %v411
      %v426 = vpack.c.b16 %v414, %v413
      %v427 = vpack.c.b16 %v416, %v415
      %v428 = vpack.c.b16 %v418, %v417
      %v429 = vpack.c.b16 %v420, %v419
      %v439 = vsel %vm352, %v269, 0
      %441 = vmatpush.bf16.msra.mxu0 %v428
      %442 = vmatpush.bf16.msra.mxu0 %v427
      %443 = vmatpush.bf16.msra.mxu0 %v426
      %444 = vmatpush.bf16.msra.mxu0 %v425
      %445 = vmatpush.bf16.msra.mxu0 %v424
      %446 = vmatpush.bf16.msra.mxu0 %v423
      %447 = vmatpush.bf16.msra.mxu0 %v422
      %448 = vmatpush.bf16.msra.mxu0 %v421
      %449 = vmatmul.bf16.gmra.mxu0 %v268
      %v450 = vpop.f32.mrf.mxu0
      %v451 = vadd.f32 %v380, %v450
      %v452 = vpop.f32.mrf.mxu0
      %v453 = vadd.f32 %v382, %v452
      %454 = vdwg.mxu0
      %455 = vmatpush.bf16.msra.mxu0 0
      %456 = vmatpush.bf16.msra.mxu0 0
      %457 = vmatpush.bf16.msra.mxu0 0
      %458 = vmatpush.bf16.msra.mxu0 0
      %459 = vmatpush.bf16.msra.mxu0 0
      %460 = vmatpush.bf16.msra.mxu0 0
      %461 = vmatpush.bf16.msra.mxu0 0
      %462 = vmatpush.bf16.msra.mxu0 %v429
      %463 = vmatmul.bf16.gmra.mxu0 %v439
      %v464 = vpop.f32.mrf.mxu0
      %v465 = vadd.f32 %v451, %v464
      %v466 = vpop.f32.mrf.mxu0
      %v467 = vadd.f32 %v453, %v466
      %468 = vdwg.mxu0
      %v469 = vld [vmem:[%s207] sm:$0xee]
      %s470 = scalar_lea.vmem %s2, 144
      %v471 = vld [vmem:[%s470] sm:$0xf]
      %v472 = vld [vmem:[%s470 + $0x4] sm:$0xf]
      %v473 = vld [vmem:[%s470 + $0x8] sm:$0xf]
      %v474 = vld [vmem:[%s470 + $0xc] sm:$0xf]
      %v475 = vld [vmem:[%s470 + $0x10] sm:$0xf]
      %v476 = vld [vmem:[%s470 + $0x14] sm:$0xf]
      %v477 = vld [vmem:[%s470 + $0x18] sm:$0xf]
      %v478 = vld [vmem:[%s470 + $0x1c] sm:$0xf]
      %v479 = vld [vmem:[%s470 + $0x20] sm:$0xf]
      %v480 = vld [vmem:[%s470 + $0x24] sm:$0xf]
      %v481 = vld [vmem:[%s470 + $0x28] sm:$0xf]
      %v482 = vld [vmem:[%s470 + $0x2c] sm:$0xf]
      %v483 = vld [vmem:[%s470 + $0x30] sm:$0xf]
      %v484 = vld [vmem:[%s470 + $0x34] sm:$0xf]
      %v485 = vld [vmem:[%s470 + $0x38] sm:$0xf]
      %v486 = vld [vmem:[%s470 + $0x3c] sm:$0xf]
      %v487 = vld [vmem:[%s470 + $0x40] sm:$0xf]
      %v488 = vld [vmem:[%s470 + $0x44] sm:$0xf]
      %v490 = vunpack.c.l.b16 %v469
      %v491 = vunpack.c.h.b16 %v469
      %v492 = vpack.c.b16 %v264, %v490
      %v493 = vpack.c.b16 %v265, %v491
      %vm494 = vcmask 1046528
      %v495 = vrot.slane %v492, 1
      %v496 = vrot.slane %v270, 1
      %v497 = vsel %vm494, %v495, %v496
      %v498 = vrot.slane %v493, 1
      %v499 = vrot.slane %v271, 1
      %v500 = vsel %vm494, %v498, %v499
      %v520 = vunpack.c.l.b16 %v471
      %v521 = vunpack.c.l.b16 %v472
      %v522 = vunpack.c.l.b16 %v473
      %v523 = vunpack.c.l.b16 %v474
      %v524 = vunpack.c.l.b16 %v475
      %v525 = vunpack.c.l.b16 %v476
      %v526 = vunpack.c.l.b16 %v477
      %v527 = vunpack.c.l.b16 %v478
      %v528 = vunpack.c.l.b16 %v479
      %v529 = vunpack.c.l.b16 %v480
      %v530 = vunpack.c.l.b16 %v481
      %v531 = vunpack.c.l.b16 %v482
      %v532 = vunpack.c.l.b16 %v483
      %v533 = vunpack.c.l.b16 %v484
      %v534 = vunpack.c.l.b16 %v485
      %v535 = vunpack.c.l.b16 %v486
      %v536 = vunpack.c.l.b16 %v487
      %v537 = vunpack.c.l.b16 %v488
      %v538 = vpack.c.b16 %v521, %v520
      %v539 = vpack.c.b16 %v523, %v522
      %v540 = vpack.c.b16 %v525, %v524
      %v541 = vpack.c.b16 %v527, %v526
      %v542 = vpack.c.b16 %v529, %v528
      %v543 = vpack.c.b16 %v531, %v530
      %v544 = vpack.c.b16 %v533, %v532
      %v545 = vpack.c.b16 %v535, %v534
      %v546 = vpack.c.b16 %v537, %v536
      %v557 = vsel %vm352, %v500, 0
      %559 = vmatpush.bf16.msra.mxu0 %v545
      %560 = vmatpush.bf16.msra.mxu0 %v544
      %561 = vmatpush.bf16.msra.mxu0 %v543
      %562 = vmatpush.bf16.msra.mxu0 %v542
      %563 = vmatpush.bf16.msra.mxu0 %v541
      %564 = vmatpush.bf16.msra.mxu0 %v540
      %565 = vmatpush.bf16.msra.mxu0 %v539
      %566 = vmatpush.bf16.msra.mxu0 %v538
      %567 = vmatmul.bf16.gmra.mxu0 %v497
      %v568 = vpop.f32.mrf.mxu0
      %v569 = vadd.f32 0.0, %v568
      %v570 = vpop.f32.mrf.mxu0
      %v571 = vadd.f32 0.0, %v570
      %572 = vdwg.mxu0
      %573 = vmatpush.bf16.msra.mxu0 0
      %574 = vmatpush.bf16.msra.mxu0 0
      %575 = vmatpush.bf16.msra.mxu0 0
      %576 = vmatpush.bf16.msra.mxu0 0
      %577 = vmatpush.bf16.msra.mxu0 0
      %578 = vmatpush.bf16.msra.mxu0 0
      %579 = vmatpush.bf16.msra.mxu0 0
      %580 = vmatpush.bf16.msra.mxu0 %v546
      %581 = vmatmul.bf16.gmra.mxu0 %v557
      %v582 = vpop.f32.mrf.mxu0
      %v583 = vadd.f32 %v569, %v582
      %v584 = vpop.f32.mrf.mxu0
      %v585 = vadd.f32 %v571, %v584
      %586 = vdwg.mxu0
      %v587 = vadd.f32 %v465, %v583
      %v588 = vadd.f32 %v467, %v585
      %v589 = vld [vmem:[%s212] sm:$0xff]
      %v590 = vld [vmem:[%s212 + $0x8] sm:$0xff]
      %v591 = vadd.f32 %v589, %v587
      %v592 = vadd.f32 %v590, %v588
      %v593 = vld [vmem:[%s3] sm:$0x1]
      %v595 = vperm.slane %v593, 0
      %v597 = vadd.f32 %v591, %v595
      %v598 = vadd.f32 %v592, %v595
      %599 = vst [vmem:[%s217] sm:$0xff] %v597
      %600 = vst [vmem:[%s217 + $0x8] sm:$0xff] %v598
      %p601 = scmp.lt.s32.totalorder %s15, 1
      %s602 = scalar_select %p601, %s15, 1
      %s603 = smul.addr %s602, 2
      %s604 = smul.addr %s603, 8
      %s605 = scalar_lea.vmem %s4, %s604
      // Predicated region
      $region37: #{shortcut_block.1} parent=35 // pred_check
        %p606 = pneg %p127
      $region38: #{shortcut_block.1} parent=35 // pred_check_branch
        %608 = sbr.rel (%p606) target = $region40
      $region39: #{shortcut_block.1} parent=35 // pred_region
        _
      $region40: #{shortcut_block.1} parent=35 // pred_fallthru
        _
    $region36: #{shortcut_block.1} parent=5 // pred_fallthru
      _
    %p609 = scmp.le.s32.totalorder 2, %s10
    // Predicated region
    $region41: #{shortcut_block.1} parent=5 // pred_check
      %p610 = pneg %p609
    $region42: #{shortcut_block.1} parent=5 // pred_check_branch
      %612 = sbr.rel (%p610) target = $region44
    $region43: #{shortcut_block.1} parent=5 // pred_region
      %s613 = ssub.s32 %s10, 2
      // Predicated region
      $region45: #{shortcut_block.1} parent=43 // pred_check
        %p614 = pneg %p133
      $region46: #{shortcut_block.1} parent=43 // pred_check_branch
        %616 = sbr.rel (%p614) target = $region48
      $region47: #{shortcut_block.1} parent=43 // pred_region
        %p617 = scmp.lt.s32.totalorder %s16, 1
        %s618 = scalar_select %p617, %s16, 1
        %s619 = smul.addr %s618, 2
        %s620 = smul.addr %s619, 8
        %s621 = scalar_lea.vmem %s4, %s620
      $region48: #{shortcut_block.1} parent=43 // pred_fallthru
        _
    $region44: #{shortcut_block.1} parent=5 // pred_fallthru
      _
  $region6: #{shortcut_block.1} parent=0 // loop_footer
    %s14 = sadd.s32 1, %s10
  $region7: #{shortcut_block.1} parent=0 // loop_footer_branch
    %9 = sbr.rel target = $region3
  $region8: #{shortcut_block.1} parent=0 // loop_exit
    _

</llo_original>
